<compile_context>
chip_gen: v7x
topology: tpu7x:2x2x1
jax: 0.10.0
libtpu: 0.0.40
codegen_flags: <defaults>
</compile_context>

<pallas_src>
import jax
import jax.numpy as jnp
import numpy as np
from jax.experimental import pallas as pl
from jax.experimental.pallas import tpu as pltpu

LANE = 128


def out_head_kernel(w_ref, b_ref, x_ref, o_ref):
    """Pointwise (1x1x1) conv on one (batch, row-tile) slab of dense (rows, 128) vregs.

    w_ref : SMEM (C_out, C_in) f32    -- conv weight (scalar-splat FMAs)
    b_ref : SMEM (C_out,)      f32    -- conv bias
    x_ref : VMEM (C_in, r_tile, 128)  -- spatial axis folded into (rows, lanes)
    o_ref : VMEM (C_out, r_tile, 128)
    """
    c_in, r_tile, lane = x_ref.shape
    c_out = o_ref.shape[0]
    # Statically unrolled: C_out / C_in are single-digit. Each step is one dense
    # (r_tile, 128) slab; weights are SMEM scalars so the splat is free on the VPU.
    for o in range(c_out):
        acc = jnp.full((r_tile, lane), b_ref[o], dtype=jnp.float32)
        for c in range(c_in):
            acc = acc + w_ref[o, c] * x_ref[c].astype(jnp.float32)
        o_ref[o] = acc.astype(o_ref.dtype)


def _pick_r_tile(R, B, c_in, c_out, in_itemsize, out_itemsize):
    """Rows-of-128 per grid step: biggest tile under a conservative double-buffered budget."""
    bytes_per_row = LANE * (c_in * in_itemsize + c_out * out_itemsize) * 2  # x2: double buffer
    budget = 8 << 20  # ~8 MiB in+out per step: fits v5e 16 MiB scoped default / v7x 64 MiB VMEM
    cap = max(8, (budget // bytes_per_row) // 8 * 8)
    if R <= cap:
        r_tile = R  # single full-extent tile along R (legal for any R)
        # v7x megacore: with a single batch make sure the parallel grid has >= 2 blocks.
        if B == 1 and R >= 16:
            half = ((-(-R // 2)) + 7) // 8 * 8
            if half < R:
                r_tile = half
        return r_tile
    return cap  # multiple of 8; a partial last block (if any) is masked by Pallas


def out_forward(x, conv_weight, conv_bias):
    """x: (B, C_in, D, H, W); conv_weight: (C_out, C_in, 1, 1, 1); conv_bias: (C_out,)."""
    B, C_in, D, H, W = x.shape
    C_out = conv_weight.shape[0]
    S = D * H * W
    R = -(-S // LANE)          # rows of 128 lanes
    S_pad = R * LANE

    x_flat = x.reshape(B, C_in, S)
    if S_pad != S:
        x_flat = jnp.pad(x_flat, ((0, 0), (0, 0), (0, S_pad - S)))
    x4 = x_flat.reshape(B, C_in, R, LANE)

    w2 = conv_weight.reshape(C_out, C_in).astype(jnp.float32)
    b1 = conv_bias.reshape(C_out).astype(jnp.float32)

    out_dtype = x.dtype
    r_tile = _pick_r_tile(R, B, C_in, C_out,
                          x.dtype.itemsize, jnp.dtype(out_dtype).itemsize)
    grid = (B, pl.cdiv(R, r_tile))

    out4 = pl.pallas_call(
        out_head_kernel,
        out_shape=jax.ShapeDtypeStruct((B, C_out, R, LANE), out_dtype),
        grid_spec=pltpu.PrefetchScalarGridSpec(
            num_scalar_prefetch=0,
            grid=grid,
            in_specs=[
                pl.BlockSpec(memory_space=pltpu.MemorySpace.SMEM),   # weight (C_out, C_in)
                pl.BlockSpec(memory_space=pltpu.MemorySpace.SMEM),   # bias   (C_out,)
                pl.BlockSpec((None, C_in, r_tile, LANE), lambda b, r: (b, 0, r, 0)),
            ],
            out_specs=pl.BlockSpec((None, C_out, r_tile, LANE), lambda b, r: (b, 0, r, 0)),
        ),
        compiler_params=pltpu.CompilerParams(
            dimension_semantics=("parallel", "parallel")),
    )(w2, b1, x4)

    out_flat = out4.reshape(B, C_out, S_pad)
    if S_pad != S:
        out_flat = out_flat[:, :, :S]
    return out_flat.reshape(B, C_out, D, H, W)


if __name__ == "__main__":
    key = jax.random.PRNGKey(0)
    k_x, k_w, k_b = jax.random.split(key, 3)

    # Small shapes consistent with the head: B=2, in_channels=4, num_classes=3, D=8, H=W=16.
    B, C_in, num_classes = 2, 4, 3
    D, H, W = 8, 16, 16

    x = jax.random.normal(k_x, (B, C_in, D, H, W), dtype=jnp.float32)
    fan_in = float(C_in)  # 1x1x1 kernel -> fan_in = in_channels
    conv_weight = (jax.random.normal(k_w, (num_classes, C_in, 1, 1, 1), dtype=jnp.float32)
                   / np.sqrt(fan_in))
    conv_bias = jax.random.normal(k_b, (num_classes,), dtype=jnp.float32) * 0.01

    # TODO(synk): training-mode nn.Dropout (torch RNG) is not replicated; eval-mode identity used.
    out = jax.block_until_ready(out_forward(x, conv_weight, conv_bias))

    # Pure-JAX reference for the 1x1x1 conv.
    ref = (jnp.einsum("oc,bcdhw->bodhw", conv_weight.reshape(num_classes, C_in), x)
           + conv_bias[None, :, None, None, None])
    ref = jax.block_until_ready(ref)

    assert out.shape == (B, num_classes, D, H, W), out.shape
    np.testing.assert_allclose(np.asarray(out), np.asarray(ref), rtol=1e-4, atol=1e-5)
    print("KERNEL_OK")
</pallas_src>

<mosaic_0001>
module attributes {stable_mosaic.version = 11 : i64} {
  func.func @out_head_kernel(%arg0: i32, %arg1: i32, %arg2: memref<3x4xf32, #tpu.memory_space<smem>>, %arg3: memref<3xf32, #tpu.memory_space<smem>>, %arg4: memref<1x4x16x128xf32, #tpu.memory_space<vmem>>, %arg5: memref<1x3x16x128xf32, #tpu.memory_space<vmem>>) attributes {dimension_semantics = [#tpu.dimension_semantics<parallel>, #tpu.dimension_semantics<parallel>], iteration_bounds = array<i64: 2, 1>, scalar_prefetch = 0 : i64, scratch_operands = 0 : i64, tpu.core_type = #tpu.core_type<tc>, window_params = [{transform_indices = @transform_0, window_bounds = array<i64: 3, 4>}, {transform_indices = @transform_1, window_bounds = array<i64: 3>}, {transform_indices = @transform_2, window_bounds = array<i64: 1, 4, 16, 128>}, {transform_indices = @transform_3, window_bounds = array<i64: 1, 3, 16, 128>}]} {
    %c0 = arith.constant 0 : index
    %0 = memref.load %arg3[%c0] : memref<3xf32, #tpu.memory_space<smem>>
    %1 = vector.broadcast %0 : f32 to vector<16x128xf32>
    %c0_0 = arith.constant 0 : index
    %c0_1 = arith.constant 0 : index
    %2 = memref.load %arg2[%c0_0, %c0_1] : memref<3x4xf32, #tpu.memory_space<smem>>
    %c0_2 = arith.constant 0 : index
    %c0_3 = arith.constant 0 : index
    %c0_4 = arith.constant 0 : index
    %c0_5 = arith.constant 0 : index
    %3 = vector.load %arg4[%c0_2, %c0_3, %c0_4, %c0_5] : memref<1x4x16x128xf32, #tpu.memory_space<vmem>>, vector<1x1x16x128xf32>
    %4 = vector.shape_cast %3 : vector<1x1x16x128xf32> to vector<16x128xf32>
    %5 = vector.broadcast %2 : f32 to vector<16x128xf32>
    %6 = arith.mulf %5, %4 : vector<16x128xf32>
    %7 = arith.addf %1, %6 : vector<16x128xf32>
    %c0_6 = arith.constant 0 : index
    %c1 = arith.constant 1 : index
    %8 = memref.load %arg2[%c0_6, %c1] : memref<3x4xf32, #tpu.memory_space<smem>>
    %c0_7 = arith.constant 0 : index
    %c1_8 = arith.constant 1 : index
    %c0_9 = arith.constant 0 : index
    %c0_10 = arith.constant 0 : index
    %9 = vector.load %arg4[%c0_7, %c1_8, %c0_9, %c0_10] : memref<1x4x16x128xf32, #tpu.memory_space<vmem>>, vector<1x1x16x128xf32>
    %10 = vector.shape_cast %9 : vector<1x1x16x128xf32> to vector<16x128xf32>
    %11 = vector.broadcast %8 : f32 to vector<16x128xf32>
    %12 = arith.mulf %11, %10 : vector<16x128xf32>
    %13 = arith.addf %7, %12 : vector<16x128xf32>
    %c0_11 = arith.constant 0 : index
    %c2 = arith.constant 2 : index
    %14 = memref.load %arg2[%c0_11, %c2] : memref<3x4xf32, #tpu.memory_space<smem>>
    %c0_12 = arith.constant 0 : index
    %c2_13 = arith.constant 2 : index
    %c0_14 = arith.constant 0 : index
    %c0_15 = arith.constant 0 : index
    %15 = vector.load %arg4[%c0_12, %c2_13, %c0_14, %c0_15] : memref<1x4x16x128xf32, #tpu.memory_space<vmem>>, vector<1x1x16x128xf32>
    %16 = vector.shape_cast %15 : vector<1x1x16x128xf32> to vector<16x128xf32>
    %17 = vector.broadcast %14 : f32 to vector<16x128xf32>
    %18 = arith.mulf %17, %16 : vector<16x128xf32>
    %19 = arith.addf %13, %18 : vector<16x128xf32>
    %c0_16 = arith.constant 0 : index
    %c3 = arith.constant 3 : index
    %20 = memref.load %arg2[%c0_16, %c3] : memref<3x4xf32, #tpu.memory_space<smem>>
    %c0_17 = arith.constant 0 : index
    %c3_18 = arith.constant 3 : index
    %c0_19 = arith.constant 0 : index
    %c0_20 = arith.constant 0 : index
    %21 = vector.load %arg4[%c0_17, %c3_18, %c0_19, %c0_20] : memref<1x4x16x128xf32, #tpu.memory_space<vmem>>, vector<1x1x16x128xf32>
    %22 = vector.shape_cast %21 : vector<1x1x16x128xf32> to vector<16x128xf32>
    %23 = vector.broadcast %20 : f32 to vector<16x128xf32>
    %24 = arith.mulf %23, %22 : vector<16x128xf32>
    %25 = arith.addf %19, %24 : vector<16x128xf32>
    %c0_21 = arith.constant 0 : index
    %c0_22 = arith.constant 0 : index
    %c0_23 = arith.constant 0 : index
    %c0_24 = arith.constant 0 : index
    %26 = vector.load %arg5[%c0_21, %c0_22, %c0_23, %c0_24] : memref<1x3x16x128xf32, #tpu.memory_space<vmem>>, vector<1x1x16x128xf32>
    %27 = vector.shape_cast %26 : vector<1x1x16x128xf32> to vector<16x128xf32>
    %28 = vector.shape_cast %25 : vector<16x128xf32> to vector<1x1x16x128xf32>
    tpu.vector_store %arg5[%c0_21, %c0_22, %c0_23, %c0_24], %28 {strides = array<i32>} : memref<1x3x16x128xf32, #tpu.memory_space<vmem>>, vector<1x1x16x128xf32>,
    %c1_25 = arith.constant 1 : index
    %29 = memref.load %arg3[%c1_25] : memref<3xf32, #tpu.memory_space<smem>>
    %30 = vector.broadcast %29 : f32 to vector<16x128xf32>
    %c1_26 = arith.constant 1 : index
    %c0_27 = arith.constant 0 : index
    %31 = memref.load %arg2[%c1_26, %c0_27] : memref<3x4xf32, #tpu.memory_space<smem>>
    %c0_28 = arith.constant 0 : index
    %c0_29 = arith.constant 0 : index
    %c0_30 = arith.constant 0 : index
    %c0_31 = arith.constant 0 : index
    %32 = vector.load %arg4[%c0_28, %c0_29, %c0_30, %c0_31] : memref<1x4x16x128xf32, #tpu.memory_space<vmem>>, vector<1x1x16x128xf32>
    %33 = vector.shape_cast %32 : vector<1x1x16x128xf32> to vector<16x128xf32>
    %34 = vector.broadcast %31 : f32 to vector<16x128xf32>
    %35 = arith.mulf %34, %33 : vector<16x128xf32>
    %36 = arith.addf %30, %35 : vector<16x128xf32>
    %c1_32 = arith.constant 1 : index
    %c1_33 = arith.constant 1 : index
    %37 = memref.load %arg2[%c1_32, %c1_33] : memref<3x4xf32, #tpu.memory_space<smem>>
    %c0_34 = arith.constant 0 : index
    %c1_35 = arith.constant 1 : index
    %c0_36 = arith.constant 0 : index
    %c0_37 = arith.constant 0 : index
    %38 = vector.load %arg4[%c0_34, %c1_35, %c0_36, %c0_37] : memref<1x4x16x128xf32, #tpu.memory_space<vmem>>, vector<1x1x16x128xf32>
    %39 = vector.shape_cast %38 : vector<1x1x16x128xf32> to vector<16x128xf32>
    %40 = vector.broadcast %37 : f32 to vector<16x128xf32>
    %41 = arith.mulf %40, %39 : vector<16x128xf32>
    %42 = arith.addf %36, %41 : vector<16x128xf32>
    %c1_38 = arith.constant 1 : index
    %c2_39 = arith.constant 2 : index
    %43 = memref.load %arg2[%c1_38, %c2_39] : memref<3x4xf32, #tpu.memory_space<smem>>
    %c0_40 = arith.constant 0 : index
    %c2_41 = arith.constant 2 : index
    %c0_42 = arith.constant 0 : index
    %c0_43 = arith.constant 0 : index
    %44 = vector.load %arg4[%c0_40, %c2_41, %c0_42, %c0_43] : memref<1x4x16x128xf32, #tpu.memory_space<vmem>>, vector<1x1x16x128xf32>
    %45 = vector.shape_cast %44 : vector<1x1x16x128xf32> to vector<16x128xf32>
    %46 = vector.broadcast %43 : f32 to vector<16x128xf32>
    %47 = arith.mulf %46, %45 : vector<16x128xf32>
    %48 = arith.addf %42, %47 : vector<16x128xf32>
    %c1_44 = arith.constant 1 : index
    %c3_45 = arith.constant 3 : index
    %49 = memref.load %arg2[%c1_44, %c3_45] : memref<3x4xf32, #tpu.memory_space<smem>>
    %c0_46 = arith.constant 0 : index
    %c3_47 = arith.constant 3 : index
    %c0_48 = arith.constant 0 : index
    %c0_49 = arith.constant 0 : index
    %50 = vector.load %arg4[%c0_46, %c3_47, %c0_48, %c0_49] : memref<1x4x16x128xf32, #tpu.memory_space<vmem>>, vector<1x1x16x128xf32>
    %51 = vector.shape_cast %50 : vector<1x1x16x128xf32> to vector<16x128xf32>
    %52 = vector.broadcast %49 : f32 to vector<16x128xf32>
    %53 = arith.mulf %52, %51 : vector<16x128xf32>
    %54 = arith.addf %48, %53 : vector<16x128xf32>
    %c0_50 = arith.constant 0 : index
    %c1_51 = arith.constant 1 : index
    %c0_52 = arith.constant 0 : index
    %c0_53 = arith.constant 0 : index
    %55 = vector.load %arg5[%c0_50, %c1_51, %c0_52, %c0_53] : memref<1x3x16x128xf32, #tpu.memory_space<vmem>>, vector<1x1x16x128xf32>
    %56 = vector.shape_cast %55 : vector<1x1x16x128xf32> to vector<16x128xf32>
    %57 = vector.shape_cast %54 : vector<16x128xf32> to vector<1x1x16x128xf32>
    tpu.vector_store %arg5[%c0_50, %c1_51, %c0_52, %c0_53], %57 {strides = array<i32>} : memref<1x3x16x128xf32, #tpu.memory_space<vmem>>, vector<1x1x16x128xf32>,
    %c2_54 = arith.constant 2 : index
    %58 = memref.load %arg3[%c2_54] : memref<3xf32, #tpu.memory_space<smem>>
    %59 = vector.broadcast %58 : f32 to vector<16x128xf32>
    %c2_55 = arith.constant 2 : index
    %c0_56 = arith.constant 0 : index
    %60 = memref.load %arg2[%c2_55, %c0_56] : memref<3x4xf32, #tpu.memory_space<smem>>
    %c0_57 = arith.constant 0 : index
    %c0_58 = arith.constant 0 : index
    %c0_59 = arith.constant 0 : index
    %c0_60 = arith.constant 0 : index
    %61 = vector.load %arg4[%c0_57, %c0_58, %c0_59, %c0_60] : memref<1x4x16x128xf32, #tpu.memory_space<vmem>>, vector<1x1x16x128xf32>
    %62 = vector.shape_cast %61 : vector<1x1x16x128xf32> to vector<16x128xf32>
    %63 = vector.broadcast %60 : f32 to vector<16x128xf32>
    %64 = arith.mulf %63, %62 : vector<16x128xf32>
    %65 = arith.addf %59, %64 : vector<16x128xf32>
    %c2_61 = arith.constant 2 : index
    %c1_62 = arith.constant 1 : index
    %66 = memref.load %arg2[%c2_61, %c1_62] : memref<3x4xf32, #tpu.memory_space<smem>>
    %c0_63 = arith.constant 0 : index
    %c1_64 = arith.constant 1 : index
    %c0_65 = arith.constant 0 : index
    %c0_66 = arith.constant 0 : index
    %67 = vector.load %arg4[%c0_63, %c1_64, %c0_65, %c0_66] : memref<1x4x16x128xf32, #tpu.memory_space<vmem>>, vector<1x1x16x128xf32>
    %68 = vector.shape_cast %67 : vector<1x1x16x128xf32> to vector<16x128xf32>
    %69 = vector.broadcast %66 : f32 to vector<16x128xf32>
    %70 = arith.mulf %69, %68 : vector<16x128xf32>
    %71 = arith.addf %65, %70 : vector<16x128xf32>
    %c2_67 = arith.constant 2 : index
    %c2_68 = arith.constant 2 : index
    %72 = memref.load %arg2[%c2_67, %c2_68] : memref<3x4xf32, #tpu.memory_space<smem>>
    %c0_69 = arith.constant 0 : index
    %c2_70 = arith.constant 2 : index
    %c0_71 = arith.constant 0 : index
    %c0_72 = arith.constant 0 : index
    %73 = vector.load %arg4[%c0_69, %c2_70, %c0_71, %c0_72] : memref<1x4x16x128xf32, #tpu.memory_space<vmem>>, vector<1x1x16x128xf32>
    %74 = vector.shape_cast %73 : vector<1x1x16x128xf32> to vector<16x128xf32>
    %75 = vector.broadcast %72 : f32 to vector<16x128xf32>
    %76 = arith.mulf %75, %74 : vector<16x128xf32>
    %77 = arith.addf %71, %76 : vector<16x128xf32>
    %c2_73 = arith.constant 2 : index
    %c3_74 = arith.constant 3 : index
    %78 = memref.load %arg2[%c2_73, %c3_74] : memref<3x4xf32, #tpu.memory_space<smem>>
    %c0_75 = arith.constant 0 : index
    %c3_76 = arith.constant 3 : index
    %c0_77 = arith.constant 0 : index
    %c0_78 = arith.constant 0 : index
    %79 = vector.load %arg4[%c0_75, %c3_76, %c0_77, %c0_78] : memref<1x4x16x128xf32, #tpu.memory_space<vmem>>, vector<1x1x16x128xf32>
    %80 = vector.shape_cast %79 : vector<1x1x16x128xf32> to vector<16x128xf32>
    %81 = vector.broadcast %78 : f32 to vector<16x128xf32>
    %82 = arith.mulf %81, %80 : vector<16x128xf32>
    %83 = arith.addf %77, %82 : vector<16x128xf32>
    %c0_79 = arith.constant 0 : index
    %c2_80 = arith.constant 2 : index
    %c0_81 = arith.constant 0 : index
    %c0_82 = arith.constant 0 : index
    %84 = vector.load %arg5[%c0_79, %c2_80, %c0_81, %c0_82] : memref<1x3x16x128xf32, #tpu.memory_space<vmem>>, vector<1x1x16x128xf32>
    %85 = vector.shape_cast %84 : vector<1x1x16x128xf32> to vector<16x128xf32>
    %86 = vector.shape_cast %83 : vector<16x128xf32> to vector<1x1x16x128xf32>
    tpu.vector_store %arg5[%c0_79, %c2_80, %c0_81, %c0_82], %86 {strides = array<i32>} : memref<1x3x16x128xf32, #tpu.memory_space<vmem>>, vector<1x1x16x128xf32>,
    return
  }
  func.func @transform_0(%arg0: i32, %arg1: i32) -> (i32, i32) {
    %c0_i32 = arith.constant 0 : i32
    %c0_i32_0 = arith.constant 0 : i32
    %c0_i32_1 = arith.constant 0 : i32
    return %c0_i32, %c0_i32_0 : i32, i32
  }
  func.func @transform_1(%arg0: i32, %arg1: i32) -> i32 {
    %c0_i32 = arith.constant 0 : i32
    %c0_i32_0 = arith.constant 0 : i32
    return %c0_i32 : i32
  }
  func.func @transform_2(%arg0: i32, %arg1: i32) -> (i32, i32, i32, i32) {
    %c0_i32 = arith.constant 0 : i32
    %c0_i32_0 = arith.constant 0 : i32
    %c0_i32_1 = arith.constant 0 : i32
    return %arg0, %c0_i32, %arg1, %c0_i32_0 : i32, i32, i32, i32
  }
  func.func @transform_3(%arg0: i32, %arg1: i32) -> (i32, i32, i32, i32) {
    %c0_i32 = arith.constant 0 : i32
    %c0_i32_0 = arith.constant 0 : i32
    %c0_i32_1 = arith.constant 0 : i32
    return %arg0, %c0_i32, %arg1, %c0_i32_0 : i32, i32, i32, i32
  }
}

</mosaic_0001>

<llo_original>
// kernel: tpu_custom_call.1
$region0: #{tpu_custom_call.1}
  #allocation0 [shape = 'u32[]', space=smem, size = 0x4, offset = 0x4, fixed_abs, tag = 'smem constant byte address 0x4 - core index']
  #allocation1 [shape = 'u32[144,128]{1,0:T(1,128)}', space=vmem, size = 0x12000, scoped, tag = 'internal scratch']
  %s0 = inlined_call_operand.hbm [shape: f32[3,4], index: 0, kind: input, shape index: {}]
  %s1 = inlined_call_operand.vmem [shape: f32[3], index: 1, kind: input, shape index: {}]
  %s2 = inlined_call_operand.hbm [shape: f32[2,4,16,128], index: 2, kind: input, shape index: {}]
  %s3 = inlined_call_operand.hbm [shape: f32[2,3,16,128], index: 3, kind: output, shape index: {}]
  %s4 = sld [smem:[#allocation0]]
  $region57: #{tpu_custom_call.1} parent=0
    _
  %s6 = ssub.s32 1, %s4
  %s7 = scalar_select 0, %s6, %s4
  $region1: #{tpu_custom_call.1} parent=0
    #allocation2 [shape = 'u8[2048]{0}', space=smem, size = 0x800, scoped, tag = 'input window, operand 0, single buffered']
    #allocation3 [shape = 's32[2]{0}', space=sflag, size = 0x8, scoped, tag = 'scoped memory for tpu_custom_call.1']
    #allocation4 [shape = 's32[2]{0}', space=sflag, size = 0x8, scoped, tag = 'scoped memory for tpu_custom_call.1']
    #allocation5 [shape = 's32[2]{0}', space=sflag, size = 0x8, scoped, tag = 'scoped memory for tpu_custom_call.1']
    #allocation6 [shape = 's32[2]{0}', space=sflag, size = 0x8, scoped, tag = 'scoped memory for tpu_custom_call.1']
    #allocation7 [shape = 'u8[512]{0}', space=smem, size = 0x200, scoped, tag = 'input window, operand 1, single buffered']
    #allocation8 [shape = 'u8[65536]{0}', space=vmem, size = 0x10000, scoped, tag = 'input window, operand 2']
    #allocation9 [shape = 'u8[49152]{0}', space=vmem, size = 0xc000, scoped, tag = 'output window, operand 0']
    %8 = vsyncpa [#allocation5], 0
    %9 = vsyncpa [#allocation6], 0
    %10 = vsyncpa [#allocation3], 0
    %s11 = scalar_lea.sflag [#allocation3], 1
    %12 = vsyncpa %s11, 0
    %13 = vsyncpa [#allocation4], 0
    %s14 = scalar_lea.sflag [#allocation4], 1
    %15 = vsyncpa %s14, 0
    loop: start=0, step=1, limit=4
    $region2: #{tpu_custom_call.1} parent=1 // loop_pre_header
      _
    $region3: #{tpu_custom_call.1} parent=1 // loop_header
      %s17 = sphi 0, %s21
      %p18 = scmp.ge.s32.totalorder %s17, 4
      %s24 = sphi 0, %s36
      %s25 = sphi 0, %s32
      %s26 = sphi 0, %s24
      %s27 = sphi 0, %s25
      %s28 = sphi 0, %s26
      %s29 = sphi 0, %s27
      %s37 = sphi 0, %s37
      %s39 = sphi 0, %s37
      %s40 = sphi 0, %s39
      %s54 = sphi 0, %s40
      %s58 = sphi 0, %s58
      %s60 = sphi 0, %s58
      %s61 = sphi 0, %s60
      %s75 = sphi 0, %s61
      %s83 = sphi 0, %s85
      %s86 = sphi 0, %s83
      %s87 = sphi 0, %s86
      %s103 = sphi 0, %s87
      %s111 = sphi 0, %s113
      %s114 = sphi 0, %s111
      %s115 = sphi 0, %s114
      %s131 = sphi 0, %s115
    $region4: #{tpu_custom_call.1} parent=1 // loop_header_branch
      %20 = sbr.rel (%p18) target = $region8
    $region5: #{tpu_custom_call.1} parent=1 // loop_body
      %s22 = ssub.s32 %s17, 1
      %s23 = ssub.s32 %s17, 2
      %s30 = sadd.s32 1, %s25
      %p31 = scmp.ge.s32.totalorder %s30, 1
      %s32 = scalar_select %p31, 0, %s30
      %s33 = sadd.s32 1, %s24
      %s34 = scalar_select %p31, %s33, %s24
      %p35 = scmp.ge.s32.totalorder %s34, 2
      %s36 = scalar_select %p35, 0, %s34
      %s38 = sadd.s32 %s37, 1
      %p41 = scmp.eq.s32.totalorder %s17, 1
      %p42 = scmp.ne.s32.totalorder %s37, %s39
      %p43 = scmp.eq.s32.totalorder %s17, 0
      %p44 = por %p42, %p43
      %p45 = scmp.ne.s32.totalorder %s37, %s39
      %p46 = scmp.eq.s32.totalorder %s22, 1
      %p47 = por %p45, %p46
      %p48 = scmp.ne.s32.totalorder %s39, %s40
      %p49 = scmp.eq.s32.totalorder %s22, 0
      %p50 = por %p48, %p49
      %p51 = scmp.ne.s32.totalorder %s39, %s40
      %p52 = scmp.eq.s32.totalorder %s23, 1
      %p53 = por %p51, %p52
      %p55 = scmp.ne.s32.totalorder %s40, %s54
      %p56 = scmp.eq.s32.totalorder %s23, 0
      %p57 = por %p55, %p56
      %s59 = sadd.s32 %s58, 1
      %p62 = scmp.eq.s32.totalorder %s17, 1
      %p63 = scmp.ne.s32.totalorder %s58, %s60
      %p64 = scmp.eq.s32.totalorder %s17, 0
      %p65 = por %p63, %p64
      %p66 = scmp.ne.s32.totalorder %s58, %s60
      %p67 = scmp.eq.s32.totalorder %s22, 1
      %p68 = por %p66, %p67
      %p69 = scmp.ne.s32.totalorder %s60, %s61
      %p70 = scmp.eq.s32.totalorder %s22, 0
      %p71 = por %p69, %p70
      %p72 = scmp.ne.s32.totalorder %s60, %s61
      %p73 = scmp.eq.s32.totalorder %s23, 1
      %p74 = por %p72, %p73
      %p76 = scmp.ne.s32.totalorder %s61, %s75
      %p77 = scmp.eq.s32.totalorder %s23, 0
      %p78 = por %p76, %p77
      %s79 = ssub.s32 %s24, %s36
      %s80 = ssub.s32 %s25, %s32
      %s81 = sor.u32 %s79, %s80
      %p82 = scmp.eq.s32.totalorder %s81, 0
      %s84 = sadd.s32 %s83, 1
      %s85 = scalar_select %p82, %s83, %s84
      %p88 = pneg %p82
      %p89 = scmp.eq.s32.totalorder %s17, 1
      %p90 = por %p88, %p89
      %p91 = scmp.ne.s32.totalorder %s83, %s86
      %p92 = scmp.eq.s32.totalorder %s17, 0
      %p93 = por %p91, %p92
      %p94 = scmp.ne.s32.totalorder %s83, %s86
      %p95 = scmp.eq.s32.totalorder %s22, 1
      %p96 = por %p94, %p95
      %p97 = scmp.ne.s32.totalorder %s86, %s87
      %p98 = scmp.eq.s32.totalorder %s22, 0
      %p99 = por %p97, %p98
      %p100 = scmp.ne.s32.totalorder %s86, %s87
      %p101 = scmp.eq.s32.totalorder %s23, 1
      %p102 = por %p100, %p101
      %p104 = scmp.ne.s32.totalorder %s87, %s103
      %p105 = scmp.eq.s32.totalorder %s23, 0
      %p106 = por %p104, %p105
      %s107 = ssub.s32 %s24, %s36
      %s108 = ssub.s32 %s25, %s32
      %s109 = sor.u32 %s107, %s108
      %p110 = scmp.eq.s32.totalorder %s109, 0
      %s112 = sadd.s32 %s111, 1
      %s113 = scalar_select %p110, %s111, %s112
      %p116 = pneg %p110
      %p117 = scmp.eq.s32.totalorder %s17, 1
      %p118 = por %p116, %p117
      %p119 = scmp.ne.s32.totalorder %s111, %s114
      %p120 = scmp.eq.s32.totalorder %s17, 0
      %p121 = por %p119, %p120
      %p122 = scmp.ne.s32.totalorder %s111, %s114
      %p123 = scmp.eq.s32.totalorder %s22, 1
      %p124 = por %p122, %p123
      %p125 = scmp.ne.s32.totalorder %s114, %s115
      %p126 = scmp.eq.s32.totalorder %s22, 0
      %p127 = por %p125, %p126
      %p128 = scmp.ne.s32.totalorder %s114, %s115
      %p129 = scmp.eq.s32.totalorder %s23, 1
      %p130 = por %p128, %p129
      %p132 = scmp.ne.s32.totalorder %s115, %s131
      %p133 = scmp.eq.s32.totalorder %s23, 0
      %p134 = por %p132, %p133
      %p135 = scmp.le.s32.totalorder 1, %s17
      %p136 = scmp.lt.s32.totalorder %s17, 3
      %p137 = pnand %p135, %p136
      %p138 = pneg %p137
      // Predicated region
      $region9: #{tpu_custom_call.1} parent=5 // pred_check
        _
      $region10: #{tpu_custom_call.1} parent=5 // pred_check_branch
        %140 = sbr.rel (%p137) target = $region12
      $region11: #{tpu_custom_call.1} parent=5 // pred_region
        %s141 = ssub.s32 %s17, 1
        // Predicated region
        $region13: #{tpu_custom_call.1} parent=11 // pred_check
          %p142 = pneg %p50
        $region14: #{tpu_custom_call.1} parent=11 // pred_check_branch
          %144 = sbr.rel (%p142) target = $region16
        $region15: #{tpu_custom_call.1} parent=11 // pred_region
          %s146 = ssub.s32 64, 64
          %147 = vsyncadd [#allocation5], %s146
          %150 = dma.hbm_to_smem %s0, 64, [#allocation2], [#allocation5]
        $region16: #{tpu_custom_call.1} parent=11 // pred_fallthru
          _
        // Predicated region
        $region17: #{tpu_custom_call.1} parent=11 // pred_check
          %p151 = pneg %p71
        $region18: #{tpu_custom_call.1} parent=11 // pred_check_branch
          %153 = sbr.rel (%p151) target = $region20
        $region19: #{tpu_custom_call.1} parent=11 // pred_region
          %s155 = ssub.s32 16, 16
          %156 = vsyncadd [#allocation6], %s155
          %s158 = sshll.u32 %s1, 4
          %s159 = int_to_ptr.vmem [resolvable:$true] %s158
          %161 = dma.vmem_to_smem %s159, 16, [#allocation7], [#allocation6]
        $region20: #{tpu_custom_call.1} parent=11 // pred_fallthru
          _
      $region12: #{tpu_custom_call.1} parent=5 // pred_fallthru
        _
      %p162 = scmp.lt.s32.totalorder %s17, 2
      // Predicated region
      $region21: #{tpu_custom_call.1} parent=5 // pred_check
        %p163 = pneg %p162
      $region22: #{tpu_custom_call.1} parent=5 // pred_check_branch
        %165 = sbr.rel (%p163) target = $region24
      $region23: #{tpu_custom_call.1} parent=5 // pred_region
        // Predicated region
        $region25: #{tpu_custom_call.1} parent=23 // pred_check
          %p166 = pneg %p93
        $region26: #{tpu_custom_call.1} parent=23 // pred_check_branch
          %168 = sbr.rel (%p166) target = $region28
        $region27: #{tpu_custom_call.1} parent=23 // pred_region
          %s169 = sand.u32 %s83, 1
          %s170 = scalar_lea.sflag [#allocation3], %s169
          %s171 = sand.u32 %s83, 1
          %s172 = smul.addr %s171, 64
          %s173 = scalar_lea.vmem [#allocation8], %s172
          %s174 = smul.u32 2, %s25
          %s176 = ssub.s32 1024, 1024
          %177 = vsyncadd %s170, %s176
          %s178 = smul.addr %s24, 8
          %s179 = sadd.s32 %s174, %s178
          %s180 = smul.addr %s179, 128
          %s181 = scalar_lea.hbm %s2, %s180
          %s182 = sshll.u32 %s173, 4
          %s183 = int_to_ptr.vmem [resolvable:$true] %s182
          %188 = dma.hbm_to_vmem [thread:$0]  %s181, 1024, %s183, %s170, 128, 128, 8
        $region28: #{tpu_custom_call.1} parent=23 // pred_fallthru
          _
      $region24: #{tpu_custom_call.1} parent=5 // pred_fallthru
        _
      %p189 = scmp.le.s32.totalorder 1, %s17
      %p190 = scmp.lt.s32.totalorder %s17, 3
      %p191 = pnand %p189, %p190
      %p192 = pneg %p191
      // Predicated region
      $region29: #{tpu_custom_call.1} parent=5 // pred_check
        _
      $region30: #{tpu_custom_call.1} parent=5 // pred_check_branch
        %194 = sbr.rel (%p191) target = $region32
      $region31: #{tpu_custom_call.1} parent=5 // pred_region
        %s195 = ssub.s32 %s17, 1
        // Predicated region
        $region33: #{tpu_custom_call.1} parent=31 // pred_check
          %p196 = pneg %p50
        $region34: #{tpu_custom_call.1} parent=31 // pred_check_branch
          %198 = sbr.rel (%p196) target = $region36
        $region35: #{tpu_custom_call.1} parent=31 // pred_region
          %199 = dma.done [#allocation5], 64
        $region36: #{tpu_custom_call.1} parent=31 // pred_fallthru
          _
        // Predicated region
        $region37: #{tpu_custom_call.1} parent=31 // pred_check
          %p200 = pneg %p71
        $region38: #{tpu_custom_call.1} parent=31 // pred_check_branch
          %202 = sbr.rel (%p200) target = $region40
        $region39: #{tpu_custom_call.1} parent=31 // pred_region
          %203 = dma.done [#allocation6], 16
        $region40: #{tpu_custom_call.1} parent=31 // pred_fallthru
          _
        %s204 = sand.u32 %s86, 1
        %s205 = scalar_lea.sflag [#allocation3], %s204
        %s206 = sand.u32 %s86, 1
        %s207 = smul.addr %s206, 64
        %s208 = scalar_lea.vmem [#allocation8], %s207
        // Predicated region
        $region41: #{tpu_custom_call.1} parent=31 // pred_check
          %p209 = pneg %p99
        $region42: #{tpu_custom_call.1} parent=31 // pred_check_branch
          %211 = sbr.rel (%p209) target = $region44
        $region43: #{tpu_custom_call.1} parent=31 // pred_region
          %212 = dma.done %s205, 1024
        $region44: #{tpu_custom_call.1} parent=31 // pred_fallthru
          _
        %213 = sfence
        %p214 = pneg %p50
        %p215 = pneg %p47
        %p216 = pneg %p71
        %p217 = pneg %p68
        %s218 = sand.u32 %s86, 1
        %s219 = scalar_lea.sflag [#allocation3], %s218
        %s220 = sand.u32 %s86, 1
        %s221 = smul.addr %s220, 64
        %s222 = scalar_lea.vmem [#allocation8], %s221
        %p223 = pneg %p99
        %p224 = pneg %p96
        %p225 = pneg %p127
        %p226 = pneg %p124
        %s227 = sand.u32 %s114, 1
        %s228 = scalar_lea.sflag [#allocation4], %s227
        %s229 = sand.u32 %s114, 1
        %s230 = smul.addr %s229, 48
        %s231 = scalar_lea.vmem [#allocation9], %s230
        %s232 = smul.u32 2, %s27
        %s233 = smul.u32 2, %s27
        %s234 = sld [smem:[#allocation7]]
        %v235 = vstv %s234
        %s236 = sld [smem:[#allocation2]]
        %v237 = vld [vmem:[%s208] sm:$0xff]
        %v238 = vld [vmem:[%s208 + $0x8] sm:$0xff]
        %v239 = vstv %s236
        %v240 = vmul.f32 %v239, %v237
        %v241 = vmul.f32 %v239, %v238
        %v242 = vadd.f32 %v235, %v240
        %v243 = vadd.f32 %v235, %v241
        %s244 = sld [smem:[#allocation2 + $0x1]]
        %s245 = scalar_lea.vmem %s208, 16 [#allocation8]
        %v246 = vld [vmem:[%s245] sm:$0xff]
        %v247 = vld [vmem:[%s245 + $0x8] sm:$0xff]
        %v248 = vstv %s244
        %v249 = vmul.f32 %v248, %v246
        %v250 = vmul.f32 %v248, %v247
        %v251 = vadd.f32 %v242, %v249
        %v252 = vadd.f32 %v243, %v250
        %s253 = sld [smem:[#allocation2 + $0x2]]
        %s254 = scalar_lea.vmem %s208, 32 [#allocation8]
        %v255 = vld [vmem:[%s254] sm:$0xff]
        %v256 = vld [vmem:[%s254 + $0x8] sm:$0xff]
        %v257 = vstv %s253
        %v258 = vmul.f32 %v257, %v255
        %v259 = vmul.f32 %v257, %v256
        %v260 = vadd.f32 %v251, %v258
        %v261 = vadd.f32 %v252, %v259
        %s262 = sld [smem:[#allocation2 + $0x3]]
        %s263 = scalar_lea.vmem %s208, 48 [#allocation8]
        %v264 = vld [vmem:[%s263] sm:$0xff]
        %v265 = vld [vmem:[%s263 + $0x8] sm:$0xff]
        %v266 = vstv %s262
        %v267 = vmul.f32 %v266, %v264
        %v268 = vmul.f32 %v266, %v265
        %v269 = vadd.f32 %v260, %v267
        %v270 = vadd.f32 %v261, %v268
        %271 = vst [vmem:[%s231] sm:$0xff] %v269
        %272 = vst [vmem:[%s231 + $0x8] sm:$0xff] %v270
        %s273 = sld [smem:[#allocation7 + $0x1]]
        %v274 = vstv %s273
        %s275 = sld [smem:[#allocation2 + $0x80]]
        %v276 = vld [vmem:[%s208] sm:$0xff]
        %v277 = vld [vmem:[%s208 + $0x8] sm:$0xff]
        %v278 = vstv %s275
        %v279 = vmul.f32 %v278, %v276
        %v280 = vmul.f32 %v278, %v277
        %v281 = vadd.f32 %v274, %v279
        %v282 = vadd.f32 %v274, %v280
        %s283 = sld [smem:[#allocation2 + $0x81]]
        %v284 = vld [vmem:[%s245] sm:$0xff]
        %v285 = vld [vmem:[%s245 + $0x8] sm:$0xff]
        %v286 = vstv %s283
        %v287 = vmul.f32 %v286, %v284
        %v288 = vmul.f32 %v286, %v285
        %v289 = vadd.f32 %v281, %v287
        %v290 = vadd.f32 %v282, %v288
        %s291 = sld [smem:[#allocation2 + $0x82]]
        %v292 = vld [vmem:[%s254] sm:$0xff]
        %v293 = vld [vmem:[%s254 + $0x8] sm:$0xff]
        %v294 = vstv %s291
        %v295 = vmul.f32 %v294, %v292
        %v296 = vmul.f32 %v294, %v293
        %v297 = vadd.f32 %v289, %v295
        %v298 = vadd.f32 %v290, %v296
        %s299 = sld [smem:[#allocation2 + $0x83]]
        %v300 = vld [vmem:[%s263] sm:$0xff]
        %v301 = vld [vmem:[%s263 + $0x8] sm:$0xff]
        %v302 = vstv %s299
        %v303 = vmul.f32 %v302, %v300
        %v304 = vmul.f32 %v302, %v301
        %v305 = vadd.f32 %v297, %v303
        %v306 = vadd.f32 %v298, %v304
        %s307 = scalar_lea.vmem %s231, 16 [#allocation9]
        %308 = vst [vmem:[%s307] sm:$0xff] %v305
        %309 = vst [vmem:[%s307 + $0x8] sm:$0xff] %v306
        %s310 = sld [smem:[#allocation7 + $0x2]]
        %v311 = vstv %s310
        %s312 = sld [smem:[#allocation2 + $0x100]]
        %v313 = vld [vmem:[%s208] sm:$0xff]
        %v314 = vld [vmem:[%s208 + $0x8] sm:$0xff]
        %v315 = vstv %s312
        %v316 = vmul.f32 %v315, %v313
        %v317 = vmul.f32 %v315, %v314
        %v318 = vadd.f32 %v311, %v316
        %v319 = vadd.f32 %v311, %v317
        %s320 = sld [smem:[#allocation2 + $0x101]]
        %v321 = vld [vmem:[%s245] sm:$0xff]
        %v322 = vld [vmem:[%s245 + $0x8] sm:$0xff]
        %v323 = vstv %s320
        %v324 = vmul.f32 %v323, %v321
        %v325 = vmul.f32 %v323, %v322
        %v326 = vadd.f32 %v318, %v324
        %v327 = vadd.f32 %v319, %v325
        %s328 = sld [smem:[#allocation2 + $0x102]]
        %v329 = vld [vmem:[%s254] sm:$0xff]
        %v330 = vld [vmem:[%s254 + $0x8] sm:$0xff]
        %v331 = vstv %s328
        %v332 = vmul.f32 %v331, %v329
        %v333 = vmul.f32 %v331, %v330
        %v334 = vadd.f32 %v326, %v332
        %v335 = vadd.f32 %v327, %v333
        %s336 = sld [smem:[#allocation2 + $0x103]]
        %v337 = vld [vmem:[%s263] sm:$0xff]
        %v338 = vld [vmem:[%s263 + $0x8] sm:$0xff]
        %v339 = vstv %s336
        %v340 = vmul.f32 %v339, %v337
        %v341 = vmul.f32 %v339, %v338
        %v342 = vadd.f32 %v334, %v340
        %v343 = vadd.f32 %v335, %v341
        %s344 = scalar_lea.vmem %s231, 32 [#allocation9]
        %345 = vst [vmem:[%s344] sm:$0xff] %v342
        %346 = vst [vmem:[%s344 + $0x8] sm:$0xff] %v343
        %s347 = sand.u32 %s114, 1
        %s348 = scalar_lea.sflag [#allocation4], %s347
        %s349 = sand.u32 %s114, 1
        %s350 = smul.addr %s349, 48
        %s351 = scalar_lea.vmem [#allocation9], %s350
        // Predicated region
        $region45: #{tpu_custom_call.1} parent=31 // pred_check
          %p352 = pneg %p124
        $region46: #{tpu_custom_call.1} parent=31 // pred_check_branch
          %354 = sbr.rel (%p352) target = $region48
        $region47: #{tpu_custom_call.1} parent=31 // pred_region
          %s355 = smul.u32 2, %s27
          %s357 = ssub.s32 768, 768
          %358 = vsyncadd %s348, %s357
          %s359 = smul.addr %s26, 6
          %s360 = sadd.s32 %s355, %s359
          %s361 = smul.addr %s360, 128
          %s362 = scalar_lea.hbm %s3, %s361
          %s363 = sshll.u32 %s351, 4
          %s364 = int_to_ptr.vmem [resolvable:$true] %s363
          %369 = dma.vmem_to_hbm [thread:$0]  %s364, 768, %s362, %s348, 128, 128, 8
        $region48: #{tpu_custom_call.1} parent=31 // pred_fallthru
          _
      $region32: #{tpu_custom_call.1} parent=5 // pred_fallthru
        _
      %p370 = scmp.le.s32.totalorder 2, %s17
      // Predicated region
      $region49: #{tpu_custom_call.1} parent=5 // pred_check
        %p371 = pneg %p370
      $region50: #{tpu_custom_call.1} parent=5 // pred_check_branch
        %373 = sbr.rel (%p371) target = $region52
      $region51: #{tpu_custom_call.1} parent=5 // pred_region
        %s374 = ssub.s32 %s17, 2
        // Predicated region
        $region53: #{tpu_custom_call.1} parent=51 // pred_check
          %p375 = pneg %p130
        $region54: #{tpu_custom_call.1} parent=51 // pred_check_branch
          %377 = sbr.rel (%p375) target = $region56
        $region55: #{tpu_custom_call.1} parent=51 // pred_region
          %s378 = sand.u32 %s115, 1
          %s379 = scalar_lea.sflag [#allocation4], %s378
          %s380 = sand.u32 %s115, 1
          %s381 = smul.addr %s380, 48
          %s382 = scalar_lea.vmem [#allocation9], %s381
          %383 = dma.done %s379, 768
        $region56: #{tpu_custom_call.1} parent=51 // pred_fallthru
          _
      $region52: #{tpu_custom_call.1} parent=5 // pred_fallthru
        _
    $region6: #{tpu_custom_call.1} parent=1 // loop_footer
      %s21 = sadd.s32 1, %s17
    $region7: #{tpu_custom_call.1} parent=1 // loop_footer_branch
      %16 = sbr.rel target = $region3
    $region8: #{tpu_custom_call.1} parent=1 // loop_exit
      _
    %384 = vsyncpa [#allocation3], 1
    %s385 = scalar_lea.sflag [#allocation3], 1
    %386 = vsyncpa %s385, 1
    %387 = vsyncpa [#allocation4], 1
    %s388 = scalar_lea.sflag [#allocation4], 1
    %389 = vsyncpa %s388, 1
    %390 = vsyncpa [#allocation5], 1
    %s391 = scalar_lea.sflag [#allocation5], 1
    %392 = vsyncpa %s391, 1
    %393 = vsyncpa [#allocation6], 1
    %s394 = scalar_lea.sflag [#allocation6], 1
    %395 = vsyncpa %s394, 1

</llo_original>
